<compile_context>
chip_gen: v6e
topology: v6e:2x2x1
jax: 0.10.0
libtpu: 0.0.40
codegen_flags: <defaults>
</compile_context>

<pallas_src>
import functools

import numpy as np

import jax
import jax.numpy as jnp
from jax import lax
from jax.experimental import pallas as pl
from jax.experimental.pallas import tpu as pltpu


_LANE = 128                      # lane width: keep output-feature dim lane-dense
_ROW_TILE = 256                  # row-tile cap: double-buffered x/out tiles + one
                                 # (tn, hidden) weight tile fit v7x's 64 MiB VMEM
                                 # even at hidden=4096 (bf16 or f32)
_VMEM_LIMIT = 64 * 1024 * 1024   # raise v5e's 16 MiB default scoped VMEM


def _round_up(x, n):
    return ((x + n - 1) // n) * n


def _pick_col_tile(n_padded):
    """Output-feature tile; n_padded is a multiple of 128, pick a <=512 divisor."""
    for cand in (512, 256, 128):
        if n_padded % cand == 0:
            return cand
    return n_padded


def _row_tile(n_rows):
    """Fixed row tile: multiple of 16 (bf16 sublane packing), capped at 256."""
    return max(16, min(_ROW_TILE, _round_up(max(n_rows, 1), 16)))


def _dot_precision(compute_dtype):
    # f32 path matches the HIGHEST-precision reference (correctness concern);
    # bf16 path uses the native bf16 MXU.
    if np.dtype(compute_dtype) == np.dtype(np.float32):
        return lax.Precision.HIGHEST
    return lax.Precision.DEFAULT


# ---------------------------------------------------------------------------
# Kernels
# ---------------------------------------------------------------------------

def _linear_block_kernel(x_ref, w_ref, b_ref, o_ref, *, precision):
    """One (row-tile, out-feature-tile) block of  o = x @ W.T + b.

    W stays in the PyTorch [out_features, in_features] layout; dot_general
    contracts the LAST dims of (x, W) so the MXU runs the NT contraction
    natively -> no in-kernel transposes (zero XLU work).
    """
    if len(w_ref.shape) == 3:          # node path: (1, tn, hidden) group slice
        w = w_ref[0]
    else:                              # plain path: (tn, hidden)
        w = w_ref[...]
    y = lax.dot_general(
        x_ref[...], w,
        dimension_numbers=(((1,), (1,)), ((), ())),
        preferred_element_type=jnp.float32,
        precision=precision)
    o_ref[...] = (y + b_ref[...].astype(jnp.float32)).astype(o_ref.dtype)


def _node_block_kernel(tile_group_ref, x_ref, w_ref, b_ref, o_ref, *, precision):
    # tile_group_ref (SMEM, scalar-prefetched) is consumed only by the
    # index_maps; no per-row mask tensor is DMA'd at all.
    del tile_group_ref
    _linear_block_kernel(x_ref, w_ref, b_ref, o_ref, precision=precision)


def _maybe_single_buffered(shape, idx_map, invariant):
    """Single-buffer grid-invariant blocks (halves their VMEM)."""
    if invariant:
        return pl.BlockSpec(shape, idx_map, pipeline_mode=pl.Buffered(1))
    return pl.BlockSpec(shape, idx_map)


# ---------------------------------------------------------------------------
# use_node=False wrapper
# ---------------------------------------------------------------------------

def prepare_for_mha(x, w, b, *, heads, compute_dtype=jnp.float32):
    """x: [..., hidden]; w: [hidden, hidden] (PyTorch [out, in]); b: [hidden]."""
    *lead, hidden = x.shape
    assert hidden % heads == 0
    out_dtype = x.dtype
    m = int(np.prod(lead)) if lead else 1

    hp = _round_up(hidden, _LANE)          # lane-dense output slab (unmasked vst)
    tn = _pick_col_tile(hp)
    tm = _row_tile(m)
    mp = _round_up(m, tm)

    x2 = x.reshape(m, hidden).astype(compute_dtype)
    if mp != m:
        x2 = jnp.pad(x2, ((0, mp - m), (0, 0)))
    w2 = w.astype(compute_dtype)
    b2 = b.astype(jnp.float32).reshape(1, hidden)
    if hp != hidden:                       # pad out-features with zero rows/cols
        w2 = jnp.pad(w2, ((0, hp - hidden), (0, 0)))
        b2 = jnp.pad(b2, ((0, 0), (0, hp - hidden)))

    n_row, n_col = mp // tm, hp // tn
    precision = _dot_precision(compute_dtype)

    out2 = pl.pallas_call(
        functools.partial(_linear_block_kernel, precision=precision),
        out_shape=jax.ShapeDtypeStruct((mp, hp), out_dtype),
        grid_spec=pltpu.PrefetchScalarGridSpec(
            num_scalar_prefetch=0,
            grid=(n_row, n_col),
            in_specs=[
                pl.BlockSpec((tm, hidden), lambda i, j: (i, 0)),              # x rows
                _maybe_single_buffered((tn, hidden), lambda i, j: (j, 0),
                                       n_col == 1),                           # W tile
                _maybe_single_buffered((1, tn), lambda i, j: (0, j),
                                       n_col == 1),                           # bias tile
            ],
            out_specs=pl.BlockSpec((tm, tn), lambda i, j: (i, j))),
        compiler_params=pltpu.CompilerParams(
            dimension_semantics=("parallel", "parallel"),
            vmem_limit_bytes=_VMEM_LIMIT),
    )(x2, w2, b2)

    out2 = out2[:m, :hidden]
    return out2.reshape(*lead, heads, hidden // heads)


# ---------------------------------------------------------------------------
# use_node=True wrapper (mask-partition regrouping, MoE-style weight select)
# ---------------------------------------------------------------------------

def _node_position_classes(seq_len):
    """Positions owned by each of the five linears (s, r, o, a, v).

    Matches the PyTorch mask construction, which requires an odd seq_len >= 3.
    """
    assert seq_len >= 3 and (seq_len - 3) % 2 == 0, \
        "use_node=True mask construction needs odd seq_len >= 3"
    return [
        [0],                              # mask_s
        [1],                              # mask_r
        [2],                              # mask_o
        list(range(3, seq_len, 2)),       # mask_a: 3, 5, 7, ...
        list(range(4, seq_len, 2)),       # mask_v: 4, 6, 8, ...
    ]


def prepare_for_mha_node(x, weights, biases, *, heads, compute_dtype=jnp.float32):
    """x: [B, S, hidden]; weights: [5, hidden, hidden]; biases: [5, hidden].

    Every row belongs to exactly one mask class, so each row tile multiplies a
    single class weight; every row also gets the SUM of the five biases
    (each nn.Linear adds its bias to all rows in the PyTorch module).
    """
    batch, seq_len, hidden = x.shape
    assert hidden % heads == 0
    out_dtype = x.dtype
    m = batch * seq_len

    groups = []
    for ps in _node_position_classes(seq_len):
        rows = [bb * seq_len + p for p in ps for bb in range(batch)]
        groups.append(np.asarray(rows, dtype=np.int32))
    group_sizes = [len(g) for g in groups]

    hp = _round_up(hidden, _LANE)
    tn = _pick_col_tile(hp)
    tm = _row_tile(max(group_sizes))
    padded_sizes = [_round_up(s, tm) for s in group_sizes]
    offsets = np.cumsum([0] + padded_sizes)
    total = int(offsets[-1])
    n_tiles = total // tm

    # Static tile -> weight-group table, scalar-prefetched into SMEM and read
    # only by the index_maps (streams exactly one weight block per row tile).
    tile_group = np.repeat(np.arange(5, dtype=np.int32),
                           [s // tm for s in padded_sizes])

    # Gather rows into class-major order; padded slots point at one appended
    # zero row so their (discarded) outputs are well defined.
    gather_idx = np.full((total,), m, dtype=np.int32)
    unsort_idx = np.zeros((m,), dtype=np.int32)
    for c, g in enumerate(groups):
        gather_idx[offsets[c]:offsets[c] + len(g)] = g
        unsort_idx[g] = offsets[c] + np.arange(len(g), dtype=np.int32)

    x2 = x.reshape(m, hidden).astype(compute_dtype)
    x2 = jnp.concatenate([x2, jnp.zeros((1, hidden), x2.dtype)], axis=0)
    x_sorted = x2[jnp.asarray(gather_idx)]                        # [total, hidden]

    w5 = weights.astype(compute_dtype)                            # [5, hidden, hidden]
    bsum = jnp.sum(biases.astype(jnp.float32), axis=0, keepdims=True)  # [1, hidden]
    if hp != hidden:
        w5 = jnp.pad(w5, ((0, 0), (0, hp - hidden), (0, 0)))
        bsum = jnp.pad(bsum, ((0, 0), (0, hp - hidden)))

    n_col = hp // tn
    precision = _dot_precision(compute_dtype)

    y_sorted = pl.pallas_call(
        functools.partial(_node_block_kernel, precision=precision),
        out_shape=jax.ShapeDtypeStruct((total, hp), out_dtype),
        grid_spec=pltpu.PrefetchScalarGridSpec(
            num_scalar_prefetch=1,
            grid=(n_tiles, n_col),
            in_specs=[
                pl.BlockSpec((tm, hidden), lambda t, j, tg: (t, 0)),           # rows
                pl.BlockSpec((1, tn, hidden),
                             lambda t, j, tg: (tg[t], j, 0)),                  # one weight / tile
                _maybe_single_buffered((1, tn), lambda t, j, tg: (0, j),
                                       n_col == 1),                            # summed bias
            ],
            out_specs=pl.BlockSpec((tm, tn), lambda t, j, tg: (t, j))),
        compiler_params=pltpu.CompilerParams(
            dimension_semantics=("parallel", "parallel"),
            vmem_limit_bytes=_VMEM_LIMIT),
    )(jnp.asarray(tile_group), x_sorted, w5, bsum)

    out2 = y_sorted[jnp.asarray(unsort_idx), :hidden]             # undo regroup + N pad
    return out2.reshape(batch, seq_len, heads, hidden // heads)


# ---------------------------------------------------------------------------
# Pure-JAX references (mirror the PyTorch forward)
# ---------------------------------------------------------------------------

def _reference_masks(seq_len):
    k = (seq_len - 3) // 2
    mask_s = [1] + [0] * (seq_len - 1)
    mask_r = [0, 1] + [0] * (seq_len - 2)
    mask_o = [0, 0, 1] + [0] * (seq_len - 3)
    mask_a = [0, 0, 0] + [1, 0] * k
    mask_v = [0, 0, 0] + [0, 1] * k
    return np.asarray([mask_s, mask_r, mask_o, mask_a, mask_v], dtype=np.float32)


def reference_linear(x, w, b, *, heads):
    *lead, hidden = x.shape
    y = jnp.einsum('...i,oi->...o', x, w, precision=lax.Precision.HIGHEST) + b
    return y.reshape(*lead, heads, hidden // heads)


def reference_node(x, weights, biases, *, heads):
    batch, seq_len, hidden = x.shape
    masks = jnp.asarray(_reference_masks(seq_len))                # [5, S]
    y = jnp.zeros((batch, seq_len, hidden), jnp.float32)
    for i in range(5):
        xm = x * masks[i][None, :, None]
        y = y + jnp.einsum('bsi,oi->bso', xm, weights[i],
                           precision=lax.Precision.HIGHEST) + biases[i]
    return y.reshape(batch, seq_len, heads, hidden // heads)


if __name__ == "__main__":
    B, S, S_NODE, HIDDEN, HEADS = 2, 8, 9, 32, 4

    key = jax.random.PRNGKey(0)
    k_x, k_w, k_b, k_xn, k_wn, k_bn = jax.random.split(key, 6)

    # ---- use_node=False ---------------------------------------------------
    x = jax.random.normal(k_x, (B, S, HIDDEN), jnp.float32)
    w = 0.1 * jax.random.normal(k_w, (HIDDEN, HIDDEN), jnp.float32)   # [out, in]
    b = 0.1 * jax.random.normal(k_b, (HIDDEN,), jnp.float32)

    ref = reference_linear(x, w, b, heads=HEADS)

    out = jax.block_until_ready(prepare_for_mha(x, w, b, heads=HEADS))
    assert out.shape == (B, S, HEADS, HIDDEN // HEADS)
    np.testing.assert_allclose(np.asarray(out), np.asarray(ref),
                               rtol=1e-5, atol=1e-5)

    out_bf16 = jax.block_until_ready(
        prepare_for_mha(x, w, b, heads=HEADS, compute_dtype=jnp.bfloat16))
    np.testing.assert_allclose(np.asarray(out_bf16), np.asarray(ref),
                               rtol=5e-2, atol=5e-2)

    # ---- use_node=True (PyTorch mask construction needs odd seq_len) -------
    xn = jax.random.normal(k_xn, (B, S_NODE, HIDDEN), jnp.float32)
    wn = 0.1 * jax.random.normal(k_wn, (5, HIDDEN, HIDDEN), jnp.float32)
    bn = 0.1 * jax.random.normal(k_bn, (5, HIDDEN), jnp.float32)

    ref_n = reference_node(xn, wn, bn, heads=HEADS)

    out_n = jax.block_until_ready(prepare_for_mha_node(xn, wn, bn, heads=HEADS))
    assert out_n.shape == (B, S_NODE, HEADS, HIDDEN // HEADS)
    np.testing.assert_allclose(np.asarray(out_n), np.asarray(ref_n),
                               rtol=1e-5, atol=1e-5)

    out_n_bf16 = jax.block_until_ready(
        prepare_for_mha_node(xn, wn, bn, heads=HEADS, compute_dtype=jnp.bfloat16))
    np.testing.assert_allclose(np.asarray(out_n_bf16), np.asarray(ref_n),
                               rtol=5e-2, atol=5e-2)

    print("KERNEL_OK")
</pallas_src>

<mosaic_0001>
module attributes {stable_mosaic.version = 11 : i64} {
  func.func @_linear_block_kernel(%arg0: i32, %arg1: i32, %arg2: memref<16x32xf32, #tpu.memory_space<vmem>>, %arg3: memref<128x32xf32, #tpu.memory_space<vmem>>, %arg4: memref<1x128xf32, #tpu.memory_space<vmem>>, %arg5: memref<16x128xf32, #tpu.memory_space<vmem>>) attributes {dimension_semantics = [#tpu.dimension_semantics<parallel>, #tpu.dimension_semantics<parallel>], iteration_bounds = array<i64: 1, 1>, scalar_prefetch = 0 : i64, scratch_operands = 0 : i64, tpu.core_type = #tpu.core_type<tc>, window_params = [{transform_indices = @transform_0, window_bounds = array<i64: 16, 32>}, {pipeline_mode = #tpu.pipeline_mode<synchronous>, transform_indices = @transform_1, window_bounds = array<i64: 128, 32>}, {pipeline_mode = #tpu.pipeline_mode<synchronous>, transform_indices = @transform_2, window_bounds = array<i64: 1, 128>}, {transform_indices = @transform_3, window_bounds = array<i64: 16, 128>}]} {
    %c0 = arith.constant 0 : index
    %c0_0 = arith.constant 0 : index
    %0 = vector.load %arg3[%c0, %c0_0] : memref<128x32xf32, #tpu.memory_space<vmem>>, vector<128x32xf32>
    %c0_1 = arith.constant 0 : index
    %c0_2 = arith.constant 0 : index
    %1 = vector.load %arg2[%c0_1, %c0_2] : memref<16x32xf32, #tpu.memory_space<vmem>>, vector<16x32xf32>
    %cst = arith.constant dense<0.000000e+00> : vector<16x128xf32>
    %2 = tpu.matmul %1, %0, %cst {dimension_numbers = #tpu.dot_dimension_numbers<[1], [1], [0], [0], [0, 0, 1, 0], [], []>, precision = #tpu.contract_precision<fp32>} : vector<16x32xf32>, vector<128x32xf32>, vector<16x128xf32> -> vector<16x128xf32>
    %c0_3 = arith.constant 0 : index
    %c0_4 = arith.constant 0 : index
    %3 = vector.load %arg4[%c0_3, %c0_4] : memref<1x128xf32, #tpu.memory_space<vmem>>, vector<1x128xf32>
    %4 = vector.broadcast %3 : vector<1x128xf32> to vector<16x128xf32>
    %5 = arith.addf %2, %4 : vector<16x128xf32>
    %c0_5 = arith.constant 0 : index
    %c0_6 = arith.constant 0 : index
    %6 = vector.load %arg5[%c0_5, %c0_6] : memref<16x128xf32, #tpu.memory_space<vmem>>, vector<16x128xf32>
    tpu.vector_store %arg5[%c0_5, %c0_6], %5 {strides = array<i32>} : memref<16x128xf32, #tpu.memory_space<vmem>>, vector<16x128xf32>,
    return
  }
  func.func @transform_0(%arg0: i32, %arg1: i32) -> (i32, i32) {
    %c0_i32 = arith.constant 0 : i32
    %c0_i32_0 = arith.constant 0 : i32
    return %arg0, %c0_i32 : i32, i32
  }
  func.func @transform_1(%arg0: i32, %arg1: i32) -> (i32, i32) {
    %c0_i32 = arith.constant 0 : i32
    %c0_i32_0 = arith.constant 0 : i32
    return %arg1, %c0_i32 : i32, i32
  }
  func.func @transform_2(%arg0: i32, %arg1: i32) -> (i32, i32) {
    %c0_i32 = arith.constant 0 : i32
    %c0_i32_0 = arith.constant 0 : i32
    return %c0_i32, %arg1 : i32, i32
  }
  func.func @transform_3(%arg0: i32, %arg1: i32) -> (i32, i32) {
    %c0_i32 = arith.constant 0 : i32
    return %arg0, %arg1 : i32, i32
  }
}

</mosaic_0001>

<llo_original>
// kernel: tpu_custom_call.1
$region0: #{tpu_custom_call.1}
  #allocation0 [shape = 'u32[]', space=smem, size = 0x4, offset = 0x4, fixed_abs, tag = 'smem constant byte address 0x4 - core index']
  #allocation1 [shape = 'u32[144,128]{1,0:T(1,128)}', space=vmem, size = 0x12000, scoped, tag = 'internal scratch']
  %s0 = inlined_call_operand.vmem [shape: f32[16,32], index: 0, kind: input, shape index: {}]
  %s1 = inlined_call_operand.vmem [shape: f32[128,32], index: 1, kind: input, shape index: {}]
  %s2 = inlined_call_operand.vmem [shape: f32[1,128], index: 2, kind: input, shape index: {}]
  %s3 = inlined_call_operand.hbm [shape: f32[16,128], index: 3, kind: output, shape index: {}]
  %s4 = sld [smem:[#allocation0]]
  $region22: #{tpu_custom_call.1} parent=0
    _
  %s6 = ssub.s32 1, %s4
  %s7 = scalar_select 0, %s6, %s4
  $region1: #{tpu_custom_call.1} parent=0
    #allocation2 [shape = 'u8[8192]{0}', space=vmem, size = 0x2000, scoped, tag = 'output window, operand 0, single buffered']
    #allocation3 [shape = 's32[1]{0}', space=sflag, size = 0x4, scoped, tag = 'scoped memory for tpu_custom_call.1']
    %8 = vsyncpa [#allocation3], 0
    // Predicated region
    $region2: #{tpu_custom_call.1} parent=1 // pred_check
      _
    $region3: #{tpu_custom_call.1} parent=1 // pred_check_branch
      %10 = sbr.rel (0) target = $region5
    $region4: #{tpu_custom_call.1} parent=1 // pred_region
      _
    $region5: #{tpu_custom_call.1} parent=1 // pred_fallthru
      _
    // Predicated region
    $region6: #{tpu_custom_call.1} parent=1 // pred_check
      _
    $region7: #{tpu_custom_call.1} parent=1 // pred_check_branch
      %12 = sbr.rel (0) target = $region9
    $region8: #{tpu_custom_call.1} parent=1 // pred_region
      _
    $region9: #{tpu_custom_call.1} parent=1 // pred_fallthru
      _
    // Predicated region
    $region10: #{tpu_custom_call.1} parent=1 // pred_check
      _
    $region11: #{tpu_custom_call.1} parent=1 // pred_check_branch
      %14 = sbr.rel (0) target = $region13
    $region12: #{tpu_custom_call.1} parent=1 // pred_region
      _
    $region13: #{tpu_custom_call.1} parent=1 // pred_fallthru
      _
    %v15 = vld [vmem:[%s1] sm:$0xff]
    %v16 = vld [vmem:[%s1 + $0x8] sm:$0xff]
    %v17 = vld [vmem:[%s1 + $0x10] sm:$0xff]
    %v18 = vld [vmem:[%s1 + $0x18] sm:$0xff]
    %v19 = vld [vmem:[%s1 + $0x20] sm:$0xff]
    %v20 = vld [vmem:[%s1 + $0x28] sm:$0xff]
    %v21 = vld [vmem:[%s1 + $0x30] sm:$0xff]
    %v22 = vld [vmem:[%s1 + $0x38] sm:$0xff]
    %v23 = vld [vmem:[%s1 + $0x40] sm:$0xff]
    %v24 = vld [vmem:[%s1 + $0x48] sm:$0xff]
    %v25 = vld [vmem:[%s1 + $0x50] sm:$0xff]
    %v26 = vld [vmem:[%s1 + $0x58] sm:$0xff]
    %v27 = vld [vmem:[%s1 + $0x60] sm:$0xff]
    %v28 = vld [vmem:[%s1 + $0x68] sm:$0xff]
    %v29 = vld [vmem:[%s1 + $0x70] sm:$0xff]
    %v30 = vld [vmem:[%s1 + $0x78] sm:$0xff]
    %v31 = vld [vmem:[%s0] sm:$0xff]
    %v32 = vld [vmem:[%s0 + $0x8] sm:$0xff]
    %v33 = vld [vmem:[%s2] sm:$0x1]
    %v35 = vlaneseq
    %v36 = vshrl.u32 %v35, 7
    %v37 = vsub.s32 0, %v36
    %v38 = vrot.slane %v33, %v37
    %vm40 = vcmask 261120
    %v42 = vsel %vm40, %v31, 0
    %v45 = vsel %vm40, %v32, 0
    %v48 = vsel %vm40, %v15, 0
    %v51 = vsel %vm40, %v16, 0
    %v54 = vsel %vm40, %v17, 0
    %v57 = vsel %vm40, %v18, 0
    %v60 = vsel %vm40, %v19, 0
    %v63 = vsel %vm40, %v20, 0
    %v66 = vsel %vm40, %v21, 0
    %v69 = vsel %vm40, %v22, 0
    %v72 = vsel %vm40, %v23, 0
    %v75 = vsel %vm40, %v24, 0
    %v78 = vsel %vm40, %v25, 0
    %v81 = vsel %vm40, %v26, 0
    %v84 = vsel %vm40, %v27, 0
    %v87 = vsel %vm40, %v28, 0
    %v90 = vsel %vm40, %v29, 0
    %v93 = vsel %vm40, %v30, 0
    %95 = vmatprep.subr.mxu0 0.0
    %v96 = vand.u32 %v93, 4294901760
    %97 = vmatpush1.xpose.msra.mxu0 %v96
    %98 = vmatprep.subr.mxu0 0.0
    %v99 = vand.u32 %v90, 4294901760
    %100 = vmatpush1.xpose.msra.mxu0 %v99
    %101 = vmatprep.subr.mxu0 0.0
    %v102 = vand.u32 %v87, 4294901760
    %103 = vmatpush1.xpose.msra.mxu0 %v102
    %104 = vmatprep.subr.mxu0 0.0
    %v105 = vand.u32 %v84, 4294901760
    %106 = vmatpush1.xpose.msra.mxu0 %v105
    %107 = vmatprep.subr.mxu0 0.0
    %v108 = vand.u32 %v81, 4294901760
    %109 = vmatpush1.xpose.msra.mxu0 %v108
    %110 = vmatprep.subr.mxu0 0.0
    %v111 = vand.u32 %v78, 4294901760
    %112 = vmatpush1.xpose.msra.mxu0 %v111
    %113 = vmatprep.subr.mxu0 0.0
    %v114 = vand.u32 %v75, 4294901760
    %115 = vmatpush1.xpose.msra.mxu0 %v114
    %116 = vmatprep.subr.mxu0 0.0
    %v117 = vand.u32 %v72, 4294901760
    %118 = vmatpush1.xpose.msra.mxu0 %v117
    %119 = vmatprep.subr.mxu0 0.0
    %v120 = vand.u32 %v69, 4294901760
    %121 = vmatpush1.xpose.msra.mxu0 %v120
    %122 = vmatprep.subr.mxu0 0.0
    %v123 = vand.u32 %v66, 4294901760
    %124 = vmatpush1.xpose.msra.mxu0 %v123
    %125 = vmatprep.subr.mxu0 0.0
    %v126 = vand.u32 %v63, 4294901760
    %127 = vmatpush1.xpose.msra.mxu0 %v126
    %128 = vmatprep.subr.mxu0 0.0
    %v129 = vand.u32 %v60, 4294901760
    %130 = vmatpush1.xpose.msra.mxu0 %v129
    %131 = vmatprep.subr.mxu0 0.0
    %v132 = vand.u32 %v57, 4294901760
    %133 = vmatpush1.xpose.msra.mxu0 %v132
    %134 = vmatprep.subr.mxu0 0.0
    %v135 = vand.u32 %v54, 4294901760
    %136 = vmatpush1.xpose.msra.mxu0 %v135
    %137 = vmatprep.subr.mxu0 0.0
    %v138 = vand.u32 %v51, 4294901760
    %139 = vmatpush1.xpose.msra.mxu0 %v138
    %140 = vmatprep.subr.mxu0 0.0
    %v141 = vand.u32 %v48, 4294901760
    %142 = vmatpush1.xpose.msra.mxu0 %v141
    %143 = vmatprep.subr.mxu0 0.0
    %144 = vmatpush2.xpose.msra.mxu0 0.0
    %145 = vmatprep.subr.mxu0 0.0
    %146 = vmatpush2.xpose.msra.mxu0 0.0
    %147 = vmatprep.subr.mxu0 0.0
    %148 = vmatpush2.xpose.msra.mxu0 0.0
    %149 = vmatprep.subr.mxu0 0.0
    %150 = vmatpush2.xpose.msra.mxu0 0.0
    %151 = vmatprep.subr.mxu0 0.0
    %152 = vmatpush2.xpose.msra.mxu0 0.0
    %153 = vmatprep.subr.mxu0 0.0
    %154 = vmatpush2.xpose.msra.mxu0 0.0
    %155 = vmatprep.subr.mxu0 0.0
    %156 = vmatpush2.xpose.msra.mxu0 0.0
    %157 = vmatprep.subr.mxu0 0.0
    %158 = vmatpush2.xpose.msra.mxu0 0.0
    %159 = vmatprep.subr.mxu0 0.0
    %160 = vmatpush2.xpose.msra.mxu0 0.0
    %161 = vmatprep.subr.mxu0 0.0
    %162 = vmatpush2.xpose.msra.mxu0 0.0
    %163 = vmatprep.subr.mxu0 0.0
    %164 = vmatpush2.xpose.msra.mxu0 0.0
    %165 = vmatprep.subr.mxu0 0.0
    %166 = vmatpush2.xpose.msra.mxu0 0.0
    %167 = vmatprep.subr.mxu0 0.0
    %168 = vmatpush2.xpose.msra.mxu0 0.0
    %169 = vmatprep.subr.mxu0 0.0
    %170 = vmatpush2.xpose.msra.mxu0 0.0
    %171 = vmatprep.subr.mxu0 0.0
    %172 = vmatpush2.xpose.msra.mxu0 0.0
    %173 = vmatprep.subr.mxu0 0.0
    %174 = vmatpush2.xpose.msra.mxu0 0.0
    %175 = vmatprep.mubr.f32.mxu0 0.0
    %v176 = vand.u32 %v42, 4294901760
    %v177 = vsub.f32 %v42, %v176
    %v178 = vand.u32 %v177, 4294901760
    %v179 = vsub.f32 %v177, %v178
    %v180 = vand.u32 %v179, 4294901760
    %181 = vmatmul.mubr.f32.gmra.mxu0 %v180
    %v182 = vpop.f32.mrf.mxu0
    %v183 = vadd.f32 %v38, %v182
    %v184 = vpop.f32.mrf.mxu0
    %185 = vmatprep.mubr.f32.mxu0 0.0
    %v186 = vand.u32 %v45, 4294901760
    %v187 = vsub.f32 %v45, %v186
    %v188 = vand.u32 %v187, 4294901760
    %v189 = vsub.f32 %v187, %v188
    %v190 = vand.u32 %v189, 4294901760
    %191 = vmatmul.mubr.f32.gmra.mxu0 %v190
    %v192 = vpop.f32.mrf.mxu0
    %v193 = vadd.f32 %v38, %v192
    %v194 = vpop.f32.mrf.mxu0
    %195 = vdwg.mxu0
    %196 = vmatprep.subr.mxu0 0.0
    %v197 = vand.u32 %v93, 4294901760
    %v198 = vsub.f32 %v93, %v197
    %v199 = vand.u32 %v198, 4294901760
    %v200 = vsub.f32 %v198, %v199
    %v201 = vand.u32 %v200, 4294901760
    %202 = vmatpush1.xpose.msra.mxu0 %v201
    %203 = vmatprep.subr.mxu0 0.0
    %v204 = vand.u32 %v90, 4294901760
    %v205 = vsub.f32 %v90, %v204
    %v206 = vand.u32 %v205, 4294901760
    %v207 = vsub.f32 %v205, %v206
    %v208 = vand.u32 %v207, 4294901760
    %209 = vmatpush1.xpose.msra.mxu0 %v208
    %210 = vmatprep.subr.mxu0 0.0
    %v211 = vand.u32 %v87, 4294901760
    %v212 = vsub.f32 %v87, %v211
    %v213 = vand.u32 %v212, 4294901760
    %v214 = vsub.f32 %v212, %v213
    %v215 = vand.u32 %v214, 4294901760
    %216 = vmatpush1.xpose.msra.mxu0 %v215
    %217 = vmatprep.subr.mxu0 0.0
    %v218 = vand.u32 %v84, 4294901760
    %v219 = vsub.f32 %v84, %v218
    %v220 = vand.u32 %v219, 4294901760
    %v221 = vsub.f32 %v219, %v220
    %v222 = vand.u32 %v221, 4294901760
    %223 = vmatpush1.xpose.msra.mxu0 %v222
    %224 = vmatprep.subr.mxu0 0.0
    %v225 = vand.u32 %v81, 4294901760
    %v226 = vsub.f32 %v81, %v225
    %v227 = vand.u32 %v226, 4294901760
    %v228 = vsub.f32 %v226, %v227
    %v229 = vand.u32 %v228, 4294901760
    %230 = vmatpush1.xpose.msra.mxu0 %v229
    %231 = vmatprep.subr.mxu0 0.0
    %v232 = vand.u32 %v78, 4294901760
    %v233 = vsub.f32 %v78, %v232
    %v234 = vand.u32 %v233, 4294901760
    %v235 = vsub.f32 %v233, %v234
    %v236 = vand.u32 %v235, 4294901760
    %237 = vmatpush1.xpose.msra.mxu0 %v236
    %238 = vmatprep.subr.mxu0 0.0
    %v239 = vand.u32 %v75, 4294901760
    %v240 = vsub.f32 %v75, %v239
    %v241 = vand.u32 %v240, 4294901760
    %v242 = vsub.f32 %v240, %v241
    %v243 = vand.u32 %v242, 4294901760
    %244 = vmatpush1.xpose.msra.mxu0 %v243
    %245 = vmatprep.subr.mxu0 0.0
    %v246 = vand.u32 %v72, 4294901760
    %v247 = vsub.f32 %v72, %v246
    %v248 = vand.u32 %v247, 4294901760
    %v249 = vsub.f32 %v247, %v248
    %v250 = vand.u32 %v249, 4294901760
    %251 = vmatpush1.xpose.msra.mxu0 %v250
    %252 = vmatprep.subr.mxu0 0.0
    %v253 = vand.u32 %v69, 4294901760
    %v254 = vsub.f32 %v69, %v253
    %v255 = vand.u32 %v254, 4294901760
    %v256 = vsub.f32 %v254, %v255
    %v257 = vand.u32 %v256, 4294901760
    %258 = vmatpush1.xpose.msra.mxu0 %v257
    %259 = vmatprep.subr.mxu0 0.0
    %v260 = vand.u32 %v66, 4294901760
    %v261 = vsub.f32 %v66, %v260
    %v262 = vand.u32 %v261, 4294901760
    %v263 = vsub.f32 %v261, %v262
    %v264 = vand.u32 %v263, 4294901760
    %265 = vmatpush1.xpose.msra.mxu0 %v264
    %266 = vmatprep.subr.mxu0 0.0
    %v267 = vand.u32 %v63, 4294901760
    %v268 = vsub.f32 %v63, %v267
    %v269 = vand.u32 %v268, 4294901760
    %v270 = vsub.f32 %v268, %v269
    %v271 = vand.u32 %v270, 4294901760
    %272 = vmatpush1.xpose.msra.mxu0 %v271
    %273 = vmatprep.subr.mxu0 0.0
    %v274 = vand.u32 %v60, 4294901760
    %v275 = vsub.f32 %v60, %v274
    %v276 = vand.u32 %v275, 4294901760
    %v277 = vsub.f32 %v275, %v276
    %v278 = vand.u32 %v277, 4294901760
    %279 = vmatpush1.xpose.msra.mxu0 %v278
    %280 = vmatprep.subr.mxu0 0.0
    %v281 = vand.u32 %v57, 4294901760
    %v282 = vsub.f32 %v57, %v281
    %v283 = vand.u32 %v282, 4294901760
    %v284 = vsub.f32 %v282, %v283
    %v285 = vand.u32 %v284, 4294901760
    %286 = vmatpush1.xpose.msra.mxu0 %v285
    %287 = vmatprep.subr.mxu0 0.0
    %v288 = vand.u32 %v54, 4294901760
    %v289 = vsub.f32 %v54, %v288
    %v290 = vand.u32 %v289, 4294901760
    %v291 = vsub.f32 %v289, %v290
    %v292 = vand.u32 %v291, 4294901760
    %293 = vmatpush1.xpose.msra.mxu0 %v292
    %294 = vmatprep.subr.mxu0 0.0
    %v295 = vand.u32 %v51, 4294901760
    %v296 = vsub.f32 %v51, %v295
    %v297 = vand.u32 %v296, 4294901760
    %v298 = vsub.f32 %v296, %v297
    %v299 = vand.u32 %v298, 4294901760
    %300 = vmatpush1.xpose.msra.mxu0 %v299
    %301 = vmatprep.subr.mxu0 0.0
    %v302 = vand.u32 %v48, 4294901760
    %v303 = vsub.f32 %v48, %v302
    %v304 = vand.u32 %v303, 4294901760
    %v305 = vsub.f32 %v303, %v304
    %v306 = vand.u32 %v305, 4294901760
    %307 = vmatpush1.xpose.msra.mxu0 %v306
    %308 = vmatprep.subr.mxu0 0.0
    %309 = vmatpush2.xpose.msra.mxu0 0.0
    %310 = vmatprep.subr.mxu0 0.0
    %311 = vmatpush2.xpose.msra.mxu0 0.0
    %312 = vmatprep.subr.mxu0 0.0
    %313 = vmatpush2.xpose.msra.mxu0 0.0
    %314 = vmatprep.subr.mxu0 0.0
    %315 = vmatpush2.xpose.msra.mxu0 0.0
    %316 = vmatprep.subr.mxu0 0.0
    %317 = vmatpush2.xpose.msra.mxu0 0.0
    %318 = vmatprep.subr.mxu0 0.0
    %319 = vmatpush2.xpose.msra.mxu0 0.0
    %320 = vmatprep.subr.mxu0 0.0
    %321 = vmatpush2.xpose.msra.mxu0 0.0
    %322 = vmatprep.subr.mxu0 0.0
    %323 = vmatpush2.xpose.msra.mxu0 0.0
    %324 = vmatprep.subr.mxu0 0.0
    %325 = vmatpush2.xpose.msra.mxu0 0.0
    %326 = vmatprep.subr.mxu0 0.0
    %327 = vmatpush2.xpose.msra.mxu0 0.0
    %328 = vmatprep.subr.mxu0 0.0
    %329 = vmatpush2.xpose.msra.mxu0 0.0
    %330 = vmatprep.subr.mxu0 0.0
    %331 = vmatpush2.xpose.msra.mxu0 0.0
    %332 = vmatprep.subr.mxu0 0.0
    %333 = vmatpush2.xpose.msra.mxu0 0.0
    %334 = vmatprep.subr.mxu0 0.0
    %335 = vmatpush2.xpose.msra.mxu0 0.0
    %336 = vmatprep.subr.mxu0 0.0
    %337 = vmatpush2.xpose.msra.mxu0 0.0
    %338 = vmatprep.subr.mxu0 0.0
    %339 = vmatpush2.xpose.msra.mxu0 0.0
    %340 = vmatprep.mubr.f32.mxu0 0.0
    %v341 = vand.u32 %v42, 4294901760
    %342 = vmatmul.mubr.f32.gmra.mxu0 %v341
    %v343 = vpop.f32.mrf.mxu0
    %v344 = vadd.f32 %v183, %v343
    %v345 = vpop.f32.mrf.mxu0
    %346 = vmatprep.mubr.f32.mxu0 0.0
    %v347 = vand.u32 %v45, 4294901760
    %348 = vmatmul.mubr.f32.gmra.mxu0 %v347
    %v349 = vpop.f32.mrf.mxu0
    %v350 = vadd.f32 %v193, %v349
    %v351 = vpop.f32.mrf.mxu0
    %352 = vdwg.mxu0
    %353 = vmatprep.subr.mxu0 0.0
    %v354 = vand.u32 %v93, 4294901760
    %v355 = vsub.f32 %v93, %v354
    %356 = vmatpush1.xpose.msra.mxu0 %v355
    %357 = vmatprep.subr.mxu0 0.0
    %v358 = vand.u32 %v90, 4294901760
    %v359 = vsub.f32 %v90, %v358
    %360 = vmatpush1.xpose.msra.mxu0 %v359
    %361 = vmatprep.subr.mxu0 0.0
    %v362 = vand.u32 %v87, 4294901760
    %v363 = vsub.f32 %v87, %v362
    %364 = vmatpush1.xpose.msra.mxu0 %v363
    %365 = vmatprep.subr.mxu0 0.0
    %v366 = vand.u32 %v84, 4294901760
    %v367 = vsub.f32 %v84, %v366
    %368 = vmatpush1.xpose.msra.mxu0 %v367
    %369 = vmatprep.subr.mxu0 0.0
    %v370 = vand.u32 %v81, 4294901760
    %v371 = vsub.f32 %v81, %v370
    %372 = vmatpush1.xpose.msra.mxu0 %v371
    %373 = vmatprep.subr.mxu0 0.0
    %v374 = vand.u32 %v78, 4294901760
    %v375 = vsub.f32 %v78, %v374
    %376 = vmatpush1.xpose.msra.mxu0 %v375
    %377 = vmatprep.subr.mxu0 0.0
    %v378 = vand.u32 %v75, 4294901760
    %v379 = vsub.f32 %v75, %v378
    %380 = vmatpush1.xpose.msra.mxu0 %v379
    %381 = vmatprep.subr.mxu0 0.0
    %v382 = vand.u32 %v72, 4294901760
    %v383 = vsub.f32 %v72, %v382
    %384 = vmatpush1.xpose.msra.mxu0 %v383
    %385 = vmatprep.subr.mxu0 0.0
    %v386 = vand.u32 %v69, 4294901760
    %v387 = vsub.f32 %v69, %v386
    %388 = vmatpush1.xpose.msra.mxu0 %v387
    %389 = vmatprep.subr.mxu0 0.0
    %v390 = vand.u32 %v66, 4294901760
    %v391 = vsub.f32 %v66, %v390
    %392 = vmatpush1.xpose.msra.mxu0 %v391
    %393 = vmatprep.subr.mxu0 0.0
    %v394 = vand.u32 %v63, 4294901760
    %v395 = vsub.f32 %v63, %v394
    %396 = vmatpush1.xpose.msra.mxu0 %v395
    %397 = vmatprep.subr.mxu0 0.0
    %v398 = vand.u32 %v60, 4294901760
    %v399 = vsub.f32 %v60, %v398
    %400 = vmatpush1.xpose.msra.mxu0 %v399
    %401 = vmatprep.subr.mxu0 0.0
    %v402 = vand.u32 %v57, 4294901760
    %v403 = vsub.f32 %v57, %v402
    %404 = vmatpush1.xpose.msra.mxu0 %v403
    %405 = vmatprep.subr.mxu0 0.0
    %v406 = vand.u32 %v54, 4294901760
    %v407 = vsub.f32 %v54, %v406
    %408 = vmatpush1.xpose.msra.mxu0 %v407
    %409 = vmatprep.subr.mxu0 0.0
    %v410 = vand.u32 %v51, 4294901760
    %v411 = vsub.f32 %v51, %v410
    %412 = vmatpush1.xpose.msra.mxu0 %v411
    %413 = vmatprep.subr.mxu0 0.0
    %v414 = vand.u32 %v48, 4294901760
    %v415 = vsub.f32 %v48, %v414
    %416 = vmatpush1.xpose.msra.mxu0 %v415
    %417 = vmatprep.subr.mxu0 0.0
    %418 = vmatpush2.xpose.msra.mxu0 0.0
    %419 = vmatprep.subr.mxu0 0.0
    %420 = vmatpush2.xpose.msra.mxu0 0.0
    %421 = vmatprep.subr.mxu0 0.0
    %422 = vmatpush2.xpose.msra.mxu0 0.0
    %423 = vmatprep.subr.mxu0 0.0
    %424 = vmatpush2.xpose.msra.mxu0 0.0
    %425 = vmatprep.subr.mxu0 0.0
    %426 = vmatpush2.xpose.msra.mxu0 0.0
    %427 = vmatprep.subr.mxu0 0.0
    %428 = vmatpush2.xpose.msra.mxu0 0.0
    %429 = vmatprep.subr.mxu0 0.0
    %430 = vmatpush2.xpose.msra.mxu0 0.0
    %431 = vmatprep.subr.mxu0 0.0
    %432 = vmatpush2.xpose.msra.mxu0 0.0
    %433 = vmatprep.subr.mxu0 0.0
    %434 = vmatpush2.xpose.msra.mxu0 0.0
    %435 = vmatprep.subr.mxu0 0.0
    %436 = vmatpush2.xpose.msra.mxu0 0.0
    %437 = vmatprep.subr.mxu0 0.0
    %438 = vmatpush2.xpose.msra.mxu0 0.0
    %439 = vmatprep.subr.mxu0 0.0
    %440 = vmatpush2.xpose.msra.mxu0 0.0
    %441 = vmatprep.subr.mxu0 0.0
    %442 = vmatpush2.xpose.msra.mxu0 0.0
    %443 = vmatprep.subr.mxu0 0.0
    %444 = vmatpush2.xpose.msra.mxu0 0.0
    %445 = vmatprep.subr.mxu0 0.0
    %446 = vmatpush2.xpose.msra.mxu0 0.0
    %447 = vmatprep.subr.mxu0 0.0
    %448 = vmatpush2.xpose.msra.mxu0 0.0
    %449 = vmatprep.mubr.f32.mxu0 0.0
    %v450 = vand.u32 %v42, 4294901760
    %v451 = vsub.f32 %v42, %v450
    %452 = vmatmul.mubr.f32.gmra.mxu0 %v451
    %v453 = vpop.f32.mrf.mxu0
    %v454 = vadd.f32 %v344, %v453
    %v455 = vpop.f32.mrf.mxu0
    %456 = vmatprep.mubr.f32.mxu0 0.0
    %v457 = vand.u32 %v45, 4294901760
    %v458 = vsub.f32 %v45, %v457
    %459 = vmatmul.mubr.f32.gmra.mxu0 %v458
    %v460 = vpop.f32.mrf.mxu0
    %v461 = vadd.f32 %v350, %v460
    %v462 = vpop.f32.mrf.mxu0
    %463 = vdwg.mxu0
    %464 = vmatprep.subr.mxu0 0.0
    %v465 = vand.u32 %v93, 4294901760
    %466 = vmatpush1.xpose.msra.mxu0 %v465
    %467 = vmatprep.subr.mxu0 0.0
    %v468 = vand.u32 %v90, 4294901760
    %469 = vmatpush1.xpose.msra.mxu0 %v468
    %470 = vmatprep.subr.mxu0 0.0
    %v471 = vand.u32 %v87, 4294901760
    %472 = vmatpush1.xpose.msra.mxu0 %v471
    %473 = vmatprep.subr.mxu0 0.0
    %v474 = vand.u32 %v84, 4294901760
    %475 = vmatpush1.xpose.msra.mxu0 %v474
    %476 = vmatprep.subr.mxu0 0.0
    %v477 = vand.u32 %v81, 4294901760
    %478 = vmatpush1.xpose.msra.mxu0 %v477
    %479 = vmatprep.subr.mxu0 0.0
    %v480 = vand.u32 %v78, 4294901760
    %481 = vmatpush1.xpose.msra.mxu0 %v480
    %482 = vmatprep.subr.mxu0 0.0
    %v483 = vand.u32 %v75, 4294901760
    %484 = vmatpush1.xpose.msra.mxu0 %v483
    %485 = vmatprep.subr.mxu0 0.0
    %v486 = vand.u32 %v72, 4294901760
    %487 = vmatpush1.xpose.msra.mxu0 %v486
    %488 = vmatprep.subr.mxu0 0.0
    %v489 = vand.u32 %v69, 4294901760
    %490 = vmatpush1.xpose.msra.mxu0 %v489
    %491 = vmatprep.subr.mxu0 0.0
    %v492 = vand.u32 %v66, 4294901760
    %493 = vmatpush1.xpose.msra.mxu0 %v492
    %494 = vmatprep.subr.mxu0 0.0
    %v495 = vand.u32 %v63, 4294901760
    %496 = vmatpush1.xpose.msra.mxu0 %v495
    %497 = vmatprep.subr.mxu0 0.0
    %v498 = vand.u32 %v60, 4294901760
    %499 = vmatpush1.xpose.msra.mxu0 %v498
    %500 = vmatprep.subr.mxu0 0.0
    %v501 = vand.u32 %v57, 4294901760
    %502 = vmatpush1.xpose.msra.mxu0 %v501
    %503 = vmatprep.subr.mxu0 0.0
    %v504 = vand.u32 %v54, 4294901760
    %505 = vmatpush1.xpose.msra.mxu0 %v504
    %506 = vmatprep.subr.mxu0 0.0
    %v507 = vand.u32 %v51, 4294901760
    %508 = vmatpush1.xpose.msra.mxu0 %v507
    %509 = vmatprep.subr.mxu0 0.0
    %v510 = vand.u32 %v48, 4294901760
    %511 = vmatpush1.xpose.msra.mxu0 %v510
    %512 = vmatprep.subr.mxu0 0.0
    %513 = vmatpush2.xpose.msra.mxu0 0.0
    %514 = vmatprep.subr.mxu0 0.0
    %515 = vmatpush2.xpose.msra.mxu0 0.0
    %516 = vmatprep.subr.mxu0 0.0
    %517 = vmatpush2.xpose.msra.mxu0 0.0
    %518 = vmatprep.subr.mxu0 0.0
    %519 = vmatpush2.xpose.msra.mxu0 0.0
    %520 = vmatprep.subr.mxu0 0.0
    %521 = vmatpush2.xpose.msra.mxu0 0.0
    %522 = vmatprep.subr.mxu0 0.0
    %523 = vmatpush2.xpose.msra.mxu0 0.0
    %524 = vmatprep.subr.mxu0 0.0
    %525 = vmatpush2.xpose.msra.mxu0 0.0
    %526 = vmatprep.subr.mxu0 0.0
    %527 = vmatpush2.xpose.msra.mxu0 0.0
    %528 = vmatprep.subr.mxu0 0.0
    %529 = vmatpush2.xpose.msra.mxu0 0.0
    %530 = vmatprep.subr.mxu0 0.0
    %531 = vmatpush2.xpose.msra.mxu0 0.0
    %532 = vmatprep.subr.mxu0 0.0
    %533 = vmatpush2.xpose.msra.mxu0 0.0
    %534 = vmatprep.subr.mxu0 0.0
    %535 = vmatpush2.xpose.msra.mxu0 0.0
    %536 = vmatprep.subr.mxu0 0.0
    %537 = vmatpush2.xpose.msra.mxu0 0.0
    %538 = vmatprep.subr.mxu0 0.0
    %539 = vmatpush2.xpose.msra.mxu0 0.0
    %540 = vmatprep.subr.mxu0 0.0
    %541 = vmatpush2.xpose.msra.mxu0 0.0
    %542 = vmatprep.subr.mxu0 0.0
    %543 = vmatpush2.xpose.msra.mxu0 0.0
    %544 = vmatprep.mubr.f32.mxu0 0.0
    %v545 = vand.u32 %v42, 4294901760
    %v546 = vsub.f32 %v42, %v545
    %v547 = vand.u32 %v546, 4294901760
    %548 = vmatmul.mubr.f32.gmra.mxu0 %v547
    %v549 = vpop.f32.mrf.mxu0
    %v550 = vadd.f32 %v454, %v549
    %v551 = vpop.f32.mrf.mxu0
    %552 = vmatprep.mubr.f32.mxu0 0.0
    %v553 = vand.u32 %v45, 4294901760
    %v554 = vsub.f32 %v45, %v553
    %v555 = vand.u32 %v554, 4294901760
    %556 = vmatmul.mubr.f32.gmra.mxu0 %v555
    %v557 = vpop.f32.mrf.mxu0
    %v558 = vadd.f32 %v461, %v557
    %v559 = vpop.f32.mrf.mxu0
    %560 = vdwg.mxu0
    %561 = vmatprep.subr.mxu0 0.0
    %v562 = vand.u32 %v93, 4294901760
    %v563 = vsub.f32 %v93, %v562
    %v564 = vand.u32 %v563, 4294901760
    %565 = vmatpush1.xpose.msra.mxu0 %v564
    %566 = vmatprep.subr.mxu0 0.0
    %v567 = vand.u32 %v90, 4294901760
    %v568 = vsub.f32 %v90, %v567
    %v569 = vand.u32 %v568, 4294901760
    %570 = vmatpush1.xpose.msra.mxu0 %v569
    %571 = vmatprep.subr.mxu0 0.0
    %v572 = vand.u32 %v87, 4294901760
    %v573 = vsub.f32 %v87, %v572
    %v574 = vand.u32 %v573, 4294901760
    %575 = vmatpush1.xpose.msra.mxu0 %v574
    %576 = vmatprep.subr.mxu0 0.0
    %v577 = vand.u32 %v84, 4294901760
    %v578 = vsub.f32 %v84, %v577
    %v579 = vand.u32 %v578, 4294901760
    %580 = vmatpush1.xpose.msra.mxu0 %v579
    %581 = vmatprep.subr.mxu0 0.0
    %v582 = vand.u32 %v81, 4294901760
    %v583 = vsub.f32 %v81, %v582
    %v584 = vand.u32 %v583, 4294901760
    %585 = vmatpush1.xpose.msra.mxu0 %v584
    %586 = vmatprep.subr.mxu0 0.0
    %v587 = vand.u32 %v78, 4294901760
    %v588 = vsub.f32 %v78, %v587
    %v589 = vand.u32 %v588, 4294901760
    %590 = vmatpush1.xpose.msra.mxu0 %v589
    %591 = vmatprep.subr.mxu0 0.0
    %v592 = vand.u32 %v75, 4294901760
    %v593 = vsub.f32 %v75, %v592
    %v594 = vand.u32 %v593, 4294901760
    %595 = vmatpush1.xpose.msra.mxu0 %v594
    %596 = vmatprep.subr.mxu0 0.0
    %v597 = vand.u32 %v72, 4294901760
    %v598 = vsub.f32 %v72, %v597
    %v599 = vand.u32 %v598, 4294901760
    %600 = vmatpush1.xpose.msra.mxu0 %v599
    %601 = vmatprep.subr.mxu0 0.0
    %v602 = vand.u32 %v69, 4294901760
    %v603 = vsub.f32 %v69, %v602
    %v604 = vand.u32 %v603, 4294901760
    %605 = vmatpush1.xpose.msra.mxu0 %v604
    %606 = vmatprep.subr.mxu0 0.0
    %v607 = vand.u32 %v66, 4294901760
    %v608 = vsub.f32 %v66, %v607
    %v609 = vand.u32 %v608, 4294901760
    %610 = vmatpush1.xpose.msra.mxu0 %v609
    %611 = vmatprep.subr.mxu0 0.0
    %v612 = vand.u32 %v63, 4294901760
    %v613 = vsub.f32 %v63, %v612
    %v614 = vand.u32 %v613, 4294901760
    %615 = vmatpush1.xpose.msra.mxu0 %v614
    %616 = vmatprep.subr.mxu0 0.0
    %v617 = vand.u32 %v60, 4294901760
    %v618 = vsub.f32 %v60, %v617
    %v619 = vand.u32 %v618, 4294901760
    %620 = vmatpush1.xpose.msra.mxu0 %v619
    %621 = vmatprep.subr.mxu0 0.0
    %v622 = vand.u32 %v57, 4294901760
    %v623 = vsub.f32 %v57, %v622
    %v624 = vand.u32 %v623, 4294901760
    %625 = vmatpush1.xpose.msra.mxu0 %v624
    %626 = vmatprep.subr.mxu0 0.0
    %v627 = vand.u32 %v54, 4294901760
    %v628 = vsub.f32 %v54, %v627
    %v629 = vand.u32 %v628, 4294901760
    %630 = vmatpush1.xpose.msra.mxu0 %v629
    %631 = vmatprep.subr.mxu0 0.0
    %v632 = vand.u32 %v51, 4294901760
    %v633 = vsub.f32 %v51, %v632
    %v634 = vand.u32 %v633, 4294901760
    %635 = vmatpush1.xpose.msra.mxu0 %v634
    %636 = vmatprep.subr.mxu0 0.0
    %v637 = vand.u32 %v48, 4294901760
    %v638 = vsub.f32 %v48, %v637
    %v639 = vand.u32 %v638, 4294901760
    %640 = vmatpush1.xpose.msra.mxu0 %v639
    %641 = vmatprep.subr.mxu0 0.0
    %642 = vmatpush2.xpose.msra.mxu0 0.0
    %643 = vmatprep.subr.mxu0 0.0
    %644 = vmatpush2.xpose.msra.mxu0 0.0
    %645 = vmatprep.subr.mxu0 0.0
    %646 = vmatpush2.xpose.msra.mxu0 0.0
    %647 = vmatprep.subr.mxu0 0.0
    %648 = vmatpush2.xpose.msra.mxu0 0.0
    %649 = vmatprep.subr.mxu0 0.0
    %650 = vmatpush2.xpose.msra.mxu0 0.0
    %651 = vmatprep.subr.mxu0 0.0
    %652 = vmatpush2.xpose.msra.mxu0 0.0
    %653 = vmatprep.subr.mxu0 0.0
    %654 = vmatpush2.xpose.msra.mxu0 0.0
    %655 = vmatprep.subr.mxu0 0.0
    %656 = vmatpush2.xpose.msra.mxu0 0.0
    %657 = vmatprep.subr.mxu0 0.0
    %658 = vmatpush2.xpose.msra.mxu0 0.0
    %659 = vmatprep.subr.mxu0 0.0
    %660 = vmatpush2.xpose.msra.mxu0 0.0
    %661 = vmatprep.subr.mxu0 0.0
    %662 = vmatpush2.xpose.msra.mxu0 0.0
    %663 = vmatprep.subr.mxu0 0.0
    %664 = vmatpush2.xpose.msra.mxu0 0.0
    %665 = vmatprep.subr.mxu0 0.0
    %666 = vmatpush2.xpose.msra.mxu0 0.0
    %667 = vmatprep.subr.mxu0 0.0
    %668 = vmatpush2.xpose.msra.mxu0 0.0
    %669 = vmatprep.subr.mxu0 0.0
    %670 = vmatpush2.xpose.msra.mxu0 0.0
    %671 = vmatprep.subr.mxu0 0.0
    %672 = vmatpush2.xpose.msra.mxu0 0.0
    %673 = vmatprep.mubr.f32.mxu0 0.0
    %v674 = vand.u32 %v42, 4294901760
    %675 = vmatmul.mubr.f32.gmra.mxu0 %v674
    %v676 = vpop.f32.mrf.mxu0
    %v677 = vadd.f32 %v550, %v676
    %v678 = vpop.f32.mrf.mxu0
    %679 = vmatprep.mubr.f32.mxu0 0.0
    %v680 = vand.u32 %v45, 4294901760
    %681 = vmatmul.mubr.f32.gmra.mxu0 %v680
    %v682 = vpop.f32.mrf.mxu0
    %v683 = vadd.f32 %v558, %v682
    %v684 = vpop.f32.mrf.mxu0
    %685 = vdwg.mxu0
    %686 = vmatprep.subr.mxu0 0.0
    %v687 = vand.u32 %v93, 4294901760
    %688 = vmatpush1.xpose.msra.mxu0 %v687
    %689 = vmatprep.subr.mxu0 0.0
    %v690 = vand.u32 %v90, 4294901760
    %691 = vmatpush1.xpose.msra.mxu0 %v690
    %692 = vmatprep.subr.mxu0 0.0
    %v693 = vand.u32 %v87, 4294901760
    %694 = vmatpush1.xpose.msra.mxu0 %v693
    %695 = vmatprep.subr.mxu0 0.0
    %v696 = vand.u32 %v84, 4294901760
    %697 = vmatpush1.xpose.msra.mxu0 %v696
    %698 = vmatprep.subr.mxu0 0.0
    %v699 = vand.u32 %v81, 4294901760
    %700 = vmatpush1.xpose.msra.mxu0 %v699
    %701 = vmatprep.subr.mxu0 0.0
    %v702 = vand.u32 %v78, 4294901760
    %703 = vmatpush1.xpose.msra.mxu0 %v702
    %704 = vmatprep.subr.mxu0 0.0
    %v705 = vand.u32 %v75, 4294901760
    %706 = vmatpush1.xpose.msra.mxu0 %v705
    %707 = vmatprep.subr.mxu0 0.0
    %v708 = vand.u32 %v72, 4294901760
    %709 = vmatpush1.xpose.msra.mxu0 %v708
    %710 = vmatprep.subr.mxu0 0.0
    %v711 = vand.u32 %v69, 4294901760
    %712 = vmatpush1.xpose.msra.mxu0 %v711
    %713 = vmatprep.subr.mxu0 0.0
    %v714 = vand.u32 %v66, 4294901760
    %715 = vmatpush1.xpose.msra.mxu0 %v714
    %716 = vmatprep.subr.mxu0 0.0
    %v717 = vand.u32 %v63, 4294901760
    %718 = vmatpush1.xpose.msra.mxu0 %v717
    %719 = vmatprep.subr.mxu0 0.0
    %v720 = vand.u32 %v60, 4294901760
    %721 = vmatpush1.xpose.msra.mxu0 %v720
    %722 = vmatprep.subr.mxu0 0.0
    %v723 = vand.u32 %v57, 4294901760
    %724 = vmatpush1.xpose.msra.mxu0 %v723
    %725 = vmatprep.subr.mxu0 0.0
    %v726 = vand.u32 %v54, 4294901760
    %727 = vmatpush1.xpose.msra.mxu0 %v726
    %728 = vmatprep.subr.mxu0 0.0
    %v729 = vand.u32 %v51, 4294901760
    %730 = vmatpush1.xpose.msra.mxu0 %v729
    %731 = vmatprep.subr.mxu0 0.0
    %v732 = vand.u32 %v48, 4294901760
    %733 = vmatpush1.xpose.msra.mxu0 %v732
    %734 = vmatprep.subr.mxu0 0.0
    %735 = vmatpush2.xpose.msra.mxu0 0.0
    %736 = vmatprep.subr.mxu0 0.0
    %737 = vmatpush2.xpose.msra.mxu0 0.0
    %738 = vmatprep.subr.mxu0 0.0
    %739 = vmatpush2.xpose.msra.mxu0 0.0
    %740 = vmatprep.subr.mxu0 0.0
    %741 = vmatpush2.xpose.msra.mxu0 0.0
    %742 = vmatprep.subr.mxu0 0.0
    %743 = vmatpush2.xpose.msra.mxu0 0.0
    %744 = vmatprep.subr.mxu0 0.0
    %745 = vmatpush2.xpose.msra.mxu0 0.0
    %746 = vmatprep.subr.mxu0 0.0
    %747 = vmatpush2.xpose.msra.mxu0 0.0
    %748 = vmatprep.subr.mxu0 0.0
    %749 = vmatpush2.xpose.msra.mxu0 0.0
    %750 = vmatprep.subr.mxu0 0.0
    %751 = vmatpush2.xpose.msra.mxu0 0.0
    %752 = vmatprep.subr.mxu0 0.0
    %753 = vmatpush2.xpose.msra.mxu0 0.0
    %754 = vmatprep.subr.mxu0 0.0
    %755 = vmatpush2.xpose.msra.mxu0 0.0
    %756 = vmatprep.subr.mxu0 0.0
    %757 = vmatpush2.xpose.msra.mxu0 0.0
    %758 = vmatprep.subr.mxu0 0.0
    %759 = vmatpush2.xpose.msra.mxu0 0.0
    %760 = vmatprep.subr.mxu0 0.0
    %761 = vmatpush2.xpose.msra.mxu0 0.0
    %762 = vmatprep.subr.mxu0 0.0
    %763 = vmatpush2.xpose.msra.mxu0 0.0
    %764 = vmatprep.subr.mxu0 0.0
    %765 = vmatpush2.xpose.msra.mxu0 0.0
    %766 = vmatprep.mubr.f32.mxu0 0.0
    %v767 = vand.u32 %v42, 4294901760
    %768 = vmatmul.mubr.f32.gmra.mxu0 %v767
    %v769 = vpop.f32.mrf.mxu0
    %v770 = vadd.f32 %v677, %v769
    %v771 = vpop.f32.mrf.mxu0
    %772 = vmatprep.mubr.f32.mxu0 0.0
    %v773 = vand.u32 %v45, 4294901760
    %774 = vmatmul.mubr.f32.gmra.mxu0 %v773
    %v775 = vpop.f32.mrf.mxu0
    %v776 = vadd.f32 %v683, %v775
    %v777 = vpop.f32.mrf.mxu0
    %778 = vdwg.mxu0
    %779 = vst [vmem:[#allocation2] sm:$0xff] %v770
    %780 = vst [vmem:[#allocation2 + $0x8] sm:$0xff] %v776
    // Predicated region
    $region14: #{tpu_custom_call.1} parent=1 // pred_check
      _
    $region15: #{tpu_custom_call.1} parent=1 // pred_check_branch
      %782 = sbr.rel (0) target = $region17
    $region16: #{tpu_custom_call.1} parent=1 // pred_region
      %s784 = ssub.s32 256, 256
      %785 = vsyncadd [#allocation3], %s784
      %s786 = sshll.u32 [#allocation2], 4
      %s787 = int_to_ptr.vmem [resolvable:$true] %s786
      %792 = dma.vmem_to_hbm [thread:$0]  %s787, 256, %s3, [#allocation3], 128, 128, 8
    $region17: #{tpu_custom_call.1} parent=1 // pred_fallthru
      _
    // Predicated region
    $region18: #{tpu_custom_call.1} parent=1 // pred_check
      _
    $region19: #{tpu_custom_call.1} parent=1 // pred_check_branch
      %794 = sbr.rel (0) target = $region21
    $region20: #{tpu_custom_call.1} parent=1 // pred_region
      %795 = dma.done [#allocation3], 256
    $region21: #{tpu_custom_call.1} parent=1 // pred_fallthru
      _
    %796 = vsyncpa [#allocation3], 1

</llo_original>
